<compile_context>
chip_gen: v7x
topology: tpu7x:2x2x1
jax: 0.10.0
libtpu: 0.0.40
codegen_flags: <defaults>
</compile_context>

<pallas_src>
import functools

import jax
import jax.numpy as jnp
from jax.experimental import pallas as pl
from jax.experimental.pallas import tpu as pltpu


def _round_up(x, m):
    return ((x + m - 1) // m) * m


def ffn_block_kernel(x_ref, w1_ref, w2_ref, g_ref, b_ref, o_ref, *, eps, hidden_chunk):
    # Per grid step:
    #   x_ref : (tm, D)  row tile, native dtype (no upcast before the MXU)
    #   w1_ref: (D, H)   expand weight, resident across the grid
    #   w2_ref: (H, D)   contract weight, resident across the grid
    #   g_ref : (1, D)   LayerNorm gamma, pre-cast to f32 in the wrapper
    #   b_ref : (1, D)   LayerNorm beta,  pre-cast to f32 in the wrapper
    x = x_ref[...]                       # keep native dtype for the MXU
    tm, D = o_ref.shape
    H = w1_ref.shape[1]

    # expand -> contract, chunked over the hidden dim so the (tm, hc) f32
    # intermediate stays bounded.  Chunk count is static -> fully unrolled.
    hc = min(H, hidden_chunk)
    n_chunks = (H + hc - 1) // hc
    y = jnp.zeros((tm, D), jnp.float32)
    for c in range(n_chunks):
        lo = c * hc
        hi = min(H, lo + hc)
        h_c = jnp.dot(x, w1_ref[:, lo:hi], preferred_element_type=jnp.float32)
        y = y + jnp.dot(h_c.astype(x.dtype), w2_ref[lo:hi, :],
                        preferred_element_type=jnp.float32)

    # dropout: p = ff_dropout (0.0) and eval mode -> identity.
    # residual add + LayerNorm over last dim in f32 (biased variance, torch eps).
    y = y + x.astype(jnp.float32)
    mean = jnp.mean(y, axis=-1, keepdims=True)
    centered = y - mean
    var = jnp.mean(centered * centered, axis=-1, keepdims=True)
    out = centered * jax.lax.rsqrt(var + eps) * g_ref[...] + b_ref[...]
    o_ref[...] = out.astype(o_ref.dtype)


def feed_forward_block(x, w_expand, w_contract, gamma, beta, *, eps=1e-5,
                       tm=256, hidden_chunk=512,
                       vmem_limit_bytes=64 * 1024 * 1024):
    """x: (B, S, D). w_expand: (D, H). w_contract: (H, D). gamma/beta: (D,).

    Matmuls run in the native dtype of x / the weights (pass bf16 on v6e/v7x);
    residual + LayerNorm run in f32.
    """
    B, S, D = x.shape
    H = w_expand.shape[1]
    rows = B * S

    # Row tile (MXU M dim).  Keep the requested tm for realistic row counts,
    # but clamp for tiny inputs so there are still >= 2 grid steps (v7x: two
    # TensorCores share the parallel row axis) and padding stays small.
    # Always a multiple of 8 sublanes.
    tm = max(8, _round_up(tm, 8))
    tm = min(tm, max(8, _round_up(pl.cdiv(rows, 2), 8)))

    # cdiv + pad instead of asserting rows % tm == 0.
    padded_rows = _round_up(rows, tm)
    x2d = x.reshape(rows, D)
    if padded_rows != rows:
        x2d = jnp.pad(x2d, ((0, padded_rows - rows), (0, 0)))

    # Hoisted casts: gamma/beta are constant across the grid.
    g2d = gamma.reshape(1, D).astype(jnp.float32)
    b2d = beta.reshape(1, D).astype(jnp.float32)

    grid = (padded_rows // tm,)
    kernel = functools.partial(ffn_block_kernel, eps=eps, hidden_chunk=hidden_chunk)

    out2d = pl.pallas_call(
        kernel,
        out_shape=jax.ShapeDtypeStruct((padded_rows, D), x.dtype),
        grid_spec=pltpu.PrefetchScalarGridSpec(
            num_scalar_prefetch=0,
            grid=grid,
            in_specs=[
                pl.BlockSpec((tm, D), lambda i: (i, 0)),   # x row tile
                pl.BlockSpec((D, H), lambda i: (0, 0)),    # expand weight (resident)
                pl.BlockSpec((H, D), lambda i: (0, 0)),    # contract weight (resident)
                pl.BlockSpec((1, D), lambda i: (0, 0)),    # gamma (f32)
                pl.BlockSpec((1, D), lambda i: (0, 0)),    # beta (f32)
            ],
            out_specs=pl.BlockSpec((tm, D), lambda i: (i, 0)),
        ),
        compiler_params=pltpu.CompilerParams(
            dimension_semantics=("parallel",),
            vmem_limit_bytes=vmem_limit_bytes,
        ),
    )(x2d, w_expand, w_contract, g2d, b2d)

    if padded_rows != rows:
        out2d = out2d[:rows]
    return out2d.reshape(B, S, D)


def reference(x, w_expand, w_contract, gamma, beta, eps=1e-5):
    h = x @ w_expand
    y = h @ w_contract
    y = y + x
    mean = jnp.mean(y, axis=-1, keepdims=True)
    var = jnp.mean((y - mean) ** 2, axis=-1, keepdims=True)
    return (y - mean) / jnp.sqrt(var + eps) * gamma + beta


if __name__ == "__main__":
    # Shapes implied by the module: embed_dim=32, expansion_factor=4,
    # batch=2, seq=8  -> hidden = 128.
    B, S, D, EXP = 2, 8, 32, 4
    H = EXP * D

    key = jax.random.PRNGKey(0)
    kx, k1, k2 = jax.random.split(key, 3)

    x = jax.random.normal(kx, (B, S, D), dtype=jnp.float32)
    # Deterministic synthetic parameters (nn.Linear-like scale), bias=False.
    w_expand = jax.random.normal(k1, (D, H), dtype=jnp.float32) * (1.0 / (D ** 0.5))
    w_contract = jax.random.normal(k2, (H, D), dtype=jnp.float32) * (1.0 / (H ** 0.5))
    gamma = jnp.ones((D,), dtype=jnp.float32)   # LayerNorm default init
    beta = jnp.zeros((D,), dtype=jnp.float32)

    out = feed_forward_block(x, w_expand, w_contract, gamma, beta)
    out = jax.block_until_ready(out)
    ref = reference(x, w_expand, w_contract, gamma, beta)
    assert out.shape == (B, S, D)
    assert jnp.allclose(out, ref, atol=1e-4, rtol=1e-4), "mismatch vs reference"

    # Second check: awkward row count (exercises cdiv + padding) and a row
    # count large enough to use the full tm=256 tile path.
    B2, S2 = 2, 300                      # rows = 600 -> tm 256, padded to 768
    x2 = jax.random.normal(kx, (B2, S2, D), dtype=jnp.float32)
    out2 = feed_forward_block(x2, w_expand, w_contract, gamma, beta)
    out2 = jax.block_until_ready(out2)
    ref2 = reference(x2, w_expand, w_contract, gamma, beta)
    assert out2.shape == (B2, S2, D)
    assert jnp.allclose(out2, ref2, atol=1e-4, rtol=1e-4), "mismatch vs reference (padded path)"

    print("KERNEL_OK")
</pallas_src>

<mosaic_0001>
module attributes {stable_mosaic.version = 11 : i64} {
  func.func @ffn_block_kernel(%arg0: i32, %arg1: memref<8x32xf32, #tpu.memory_space<vmem>>, %arg2: memref<32x128xf32, #tpu.memory_space<vmem>>, %arg3: memref<128x32xf32, #tpu.memory_space<vmem>>, %arg4: memref<1x32xf32, #tpu.memory_space<vmem>>, %arg5: memref<1x32xf32, #tpu.memory_space<vmem>>, %arg6: memref<8x32xf32, #tpu.memory_space<vmem>>) attributes {dimension_semantics = [#tpu.dimension_semantics<parallel>], iteration_bounds = array<i64: 2>, scalar_prefetch = 0 : i64, scratch_operands = 0 : i64, tpu.core_type = #tpu.core_type<tc>, window_params = [{transform_indices = @transform_0, window_bounds = array<i64: 8, 32>}, {pipeline_mode = #tpu.pipeline_mode<synchronous>, transform_indices = @transform_1, window_bounds = array<i64: 32, 128>}, {pipeline_mode = #tpu.pipeline_mode<synchronous>, transform_indices = @transform_2, window_bounds = array<i64: 128, 32>}, {pipeline_mode = #tpu.pipeline_mode<synchronous>, transform_indices = @transform_3, window_bounds = array<i64: 1, 32>}, {pipeline_mode = #tpu.pipeline_mode<synchronous>, transform_indices = @transform_4, window_bounds = array<i64: 1, 32>}, {transform_indices = @transform_5, window_bounds = array<i64: 8, 32>}]} {
    %c0 = arith.constant 0 : index
    %c0_0 = arith.constant 0 : index
    %0 = vector.load %arg1[%c0, %c0_0] : memref<8x32xf32, #tpu.memory_space<vmem>>, vector<8x32xf32>
    %cst = arith.constant 0.000000e+00 : f32
    %1 = vector.broadcast %cst : f32 to vector<8x32xf32>
    %c0_1 = arith.constant 0 : index
    %c0_2 = arith.constant 0 : index
    %2 = vector.load %arg2[%c0_1, %c0_2] : memref<32x128xf32, #tpu.memory_space<vmem>>, vector<32x128xf32>
    %cst_3 = arith.constant dense<0.000000e+00> : vector<8x128xf32>
    %3 = tpu.matmul %0, %2, %cst_3 {dimension_numbers = #tpu.dot_dimension_numbers<[1], [0], [0], [1], [0, 0, 1, 1], [], []>} : vector<8x32xf32>, vector<32x128xf32>, vector<8x128xf32> -> vector<8x128xf32>
    %c0_4 = arith.constant 0 : index
    %c0_5 = arith.constant 0 : index
    %4 = vector.load %arg3[%c0_4, %c0_5] : memref<128x32xf32, #tpu.memory_space<vmem>>, vector<128x32xf32>
    %cst_6 = arith.constant dense<0.000000e+00> : vector<8x32xf32>
    %5 = tpu.matmul %3, %4, %cst_6 {dimension_numbers = #tpu.dot_dimension_numbers<[1], [0], [0], [1], [0, 0, 1, 1], [], []>} : vector<8x128xf32>, vector<128x32xf32>, vector<8x32xf32> -> vector<8x32xf32>
    %6 = arith.addf %1, %5 : vector<8x32xf32>
    %7 = arith.addf %6, %0 : vector<8x32xf32>
    %cst_7 = arith.constant dense<0.000000e+00> : vector<8xf32>
    %8 = vector.multi_reduction <add>, %7, %cst_7 [1] : vector<8x32xf32> to vector<8xf32>
    %9 = vector.shape_cast %8 : vector<8xf32> to vector<8x1xf32>
    %cst_8 = arith.constant 3.200000e+01 : f32
    %10 = vector.broadcast %cst_8 : f32 to vector<8x1xf32>
    %11 = arith.divf %9, %10 : vector<8x1xf32>
    %12 = vector.broadcast %11 : vector<8x1xf32> to vector<8x32xf32>
    %13 = arith.subf %7, %12 : vector<8x32xf32>
    %14 = arith.mulf %13, %13 : vector<8x32xf32>
    %cst_9 = arith.constant dense<0.000000e+00> : vector<8xf32>
    %15 = vector.multi_reduction <add>, %14, %cst_9 [1] : vector<8x32xf32> to vector<8xf32>
    %16 = vector.shape_cast %15 : vector<8xf32> to vector<8x1xf32>
    %cst_10 = arith.constant 3.200000e+01 : f32
    %17 = vector.broadcast %cst_10 : f32 to vector<8x1xf32>
    %18 = arith.divf %16, %17 : vector<8x1xf32>
    %cst_11 = arith.constant 9.99999974E-6 : f32
    %19 = vector.broadcast %cst_11 : f32 to vector<8x1xf32>
    %20 = arith.addf %18, %19 : vector<8x1xf32>
    %21 = math.rsqrt %20 : vector<8x1xf32>
    %22 = vector.broadcast %21 : vector<8x1xf32> to vector<8x32xf32>
    %23 = arith.mulf %13, %22 : vector<8x32xf32>
    %c0_12 = arith.constant 0 : index
    %c0_13 = arith.constant 0 : index
    %24 = vector.load %arg4[%c0_12, %c0_13] : memref<1x32xf32, #tpu.memory_space<vmem>>, vector<1x32xf32>
    %25 = vector.broadcast %24 : vector<1x32xf32> to vector<8x32xf32>
    %26 = arith.mulf %23, %25 : vector<8x32xf32>
    %c0_14 = arith.constant 0 : index
    %c0_15 = arith.constant 0 : index
    %27 = vector.load %arg5[%c0_14, %c0_15] : memref<1x32xf32, #tpu.memory_space<vmem>>, vector<1x32xf32>
    %28 = vector.broadcast %27 : vector<1x32xf32> to vector<8x32xf32>
    %29 = arith.addf %26, %28 : vector<8x32xf32>
    %c0_16 = arith.constant 0 : index
    %c0_17 = arith.constant 0 : index
    %30 = vector.load %arg6[%c0_16, %c0_17] : memref<8x32xf32, #tpu.memory_space<vmem>>, vector<8x32xf32>
    tpu.vector_store %arg6[%c0_16, %c0_17], %29 {strides = array<i32>} : memref<8x32xf32, #tpu.memory_space<vmem>>, vector<8x32xf32>,
    return
  }
  func.func @transform_0(%arg0: i32) -> (i32, i32) {
    %c0_i32 = arith.constant 0 : i32
    %c0_i32_0 = arith.constant 0 : i32
    return %arg0, %c0_i32 : i32, i32
  }
  func.func @transform_1(%arg0: i32) -> (i32, i32) {
    %c0_i32 = arith.constant 0 : i32
    %c0_i32_0 = arith.constant 0 : i32
    %c0_i32_1 = arith.constant 0 : i32
    return %c0_i32, %c0_i32_0 : i32, i32
  }
  func.func @transform_2(%arg0: i32) -> (i32, i32) {
    %c0_i32 = arith.constant 0 : i32
    %c0_i32_0 = arith.constant 0 : i32
    %c0_i32_1 = arith.constant 0 : i32
    return %c0_i32, %c0_i32_0 : i32, i32
  }
  func.func @transform_3(%arg0: i32) -> (i32, i32) {
    %c0_i32 = arith.constant 0 : i32
    %c0_i32_0 = arith.constant 0 : i32
    %c0_i32_1 = arith.constant 0 : i32
    return %c0_i32, %c0_i32_0 : i32, i32
  }
  func.func @transform_4(%arg0: i32) -> (i32, i32) {
    %c0_i32 = arith.constant 0 : i32
    %c0_i32_0 = arith.constant 0 : i32
    %c0_i32_1 = arith.constant 0 : i32
    return %c0_i32, %c0_i32_0 : i32, i32
  }
  func.func @transform_5(%arg0: i32) -> (i32, i32) {
    %c0_i32 = arith.constant 0 : i32
    %c0_i32_0 = arith.constant 0 : i32
    return %arg0, %c0_i32 : i32, i32
  }
}

</mosaic_0001>

<llo_original>
// kernel: tpu_custom_call.1
$region0: #{tpu_custom_call.1}
  #allocation0 [shape = 'u32[]', space=smem, size = 0x4, offset = 0x4, fixed_abs, tag = 'smem constant byte address 0x4 - core index']
  #allocation1 [shape = 'u32[144,128]{1,0:T(1,128)}', space=vmem, size = 0x12000, scoped, tag = 'internal scratch']
  %s0 = inlined_call_operand.hbm [shape: f32[16,32], index: 0, kind: input, shape index: {}]
  %s1 = inlined_call_operand.hbm [shape: f32[32,128], index: 1, kind: input, shape index: {}]
  %s2 = inlined_call_operand.hbm [shape: f32[128,32], index: 2, kind: input, shape index: {}]
  %s3 = inlined_call_operand.hbm [shape: f32[1,32], index: 3, kind: input, shape index: {}]
  %s4 = inlined_call_operand.hbm [shape: f32[1,32], index: 4, kind: input, shape index: {}]
  %s5 = inlined_call_operand.hbm [shape: f32[16,32], index: 5, kind: output, shape index: {}]
  %s6 = sld [smem:[#allocation0]]
  $region73: #{tpu_custom_call.1} parent=0
    _
  %s8 = ssub.s32 1, %s6
  %s9 = scalar_select 0, %s8, %s6
  $region1: #{tpu_custom_call.1} parent=0
    #allocation2 [shape = 'u8[8192]{0}', space=vmem, size = 0x2000, scoped, tag = 'input window, operand 0']
    #allocation3 [shape = 's32[2]{0}', space=sflag, size = 0x8, scoped, tag = 'scoped memory for tpu_custom_call.1']
    #allocation4 [shape = 's32[2]{0}', space=sflag, size = 0x8, scoped, tag = 'scoped memory for tpu_custom_call.1']
    #allocation5 [shape = 'u8[16384]{0}', space=vmem, size = 0x4000, scoped, tag = 'input window, operand 1, single buffered']
    #allocation6 [shape = 's32[1]{0}', space=sflag, size = 0x4, scoped, tag = 'scoped memory for tpu_custom_call.1']
    #allocation7 [shape = 'u8[65536]{0}', space=vmem, size = 0x10000, scoped, tag = 'input window, operand 2, single buffered']
    #allocation8 [shape = 'u8[512]{0}', space=vmem, size = 0x400, scoped, tag = 'input window, operand 3, single buffered']
    #allocation9 [shape = 's32[1]{0}', space=sflag, size = 0x4, scoped, tag = 'scoped memory for tpu_custom_call.1']
    #allocation10 [shape = 'u8[512]{0}', space=vmem, size = 0x400, scoped, tag = 'input window, operand 4, single buffered']
    #allocation11 [shape = 'u8[8192]{0}', space=vmem, size = 0x2000, scoped, tag = 'output window, operand 0']
    %10 = vsyncpa [#allocation3], 0
    %s11 = scalar_lea.sflag [#allocation3], 1
    %12 = vsyncpa %s11, 0
    %13 = vsyncpa [#allocation6], 0
    %14 = vsyncpa [#allocation9], 0
    %15 = vsyncpa [#allocation4], 0
    %s16 = scalar_lea.sflag [#allocation4], 1
    %17 = vsyncpa %s16, 0
    loop: start=0, step=1, limit=4
    $region2: #{tpu_custom_call.1} parent=1 // loop_pre_header
      _
    $region3: #{tpu_custom_call.1} parent=1 // loop_header
      %s19 = sphi 0, %s23
      %p20 = scmp.ge.s32.totalorder %s19, 4
      %s29 = sphi 0, %s31
      %s32 = sphi 0, %s29
      %s33 = sphi 0, %s32
      %s49 = sphi 0, %s33
      %s53 = sphi 0, %s53
      %s55 = sphi 0, %s53
      %s56 = sphi 0, %s55
      %s70 = sphi 0, %s56
      %s74 = sphi 0, %s74
      %s76 = sphi 0, %s74
      %s77 = sphi 0, %s76
      %s91 = sphi 0, %s77
      %s95 = sphi 0, %s95
      %s97 = sphi 0, %s95
      %s98 = sphi 0, %s97
      %s112 = sphi 0, %s98
      %s116 = sphi 0, %s116
      %s118 = sphi 0, %s116
      %s119 = sphi 0, %s118
      %s133 = sphi 0, %s119
      %s139 = sphi 0, %s141
      %s142 = sphi 0, %s139
      %s143 = sphi 0, %s142
      %s159 = sphi 0, %s143
    $region4: #{tpu_custom_call.1} parent=1 // loop_header_branch
      %22 = sbr.rel (%p20) target = $region8
    $region5: #{tpu_custom_call.1} parent=1 // loop_body
      %s24 = ssub.s32 %s19, 1
      %s25 = ssub.s32 %s19, 2
      %s26 = sadd.s32 %s19, 1
      %s27 = ssub.s32 %s19, %s26
      %p28 = scmp.eq.s32.totalorder %s27, 0
      %s30 = sadd.s32 %s29, 1
      %s31 = scalar_select %p28, %s29, %s30
      %p34 = pneg %p28
      %p35 = scmp.eq.s32.totalorder %s19, 1
      %p36 = por %p34, %p35
      %p37 = scmp.ne.s32.totalorder %s29, %s32
      %p38 = scmp.eq.s32.totalorder %s19, 0
      %p39 = por %p37, %p38
      %p40 = scmp.ne.s32.totalorder %s29, %s32
      %p41 = scmp.eq.s32.totalorder %s24, 1
      %p42 = por %p40, %p41
      %p43 = scmp.ne.s32.totalorder %s32, %s33
      %p44 = scmp.eq.s32.totalorder %s24, 0
      %p45 = por %p43, %p44
      %p46 = scmp.ne.s32.totalorder %s32, %s33
      %p47 = scmp.eq.s32.totalorder %s25, 1
      %p48 = por %p46, %p47
      %p50 = scmp.ne.s32.totalorder %s33, %s49
      %p51 = scmp.eq.s32.totalorder %s25, 0
      %p52 = por %p50, %p51
      %s54 = sadd.s32 %s53, 1
      %p57 = scmp.eq.s32.totalorder %s19, 1
      %p58 = scmp.ne.s32.totalorder %s53, %s55
      %p59 = scmp.eq.s32.totalorder %s19, 0
      %p60 = por %p58, %p59
      %p61 = scmp.ne.s32.totalorder %s53, %s55
      %p62 = scmp.eq.s32.totalorder %s24, 1
      %p63 = por %p61, %p62
      %p64 = scmp.ne.s32.totalorder %s55, %s56
      %p65 = scmp.eq.s32.totalorder %s24, 0
      %p66 = por %p64, %p65
      %p67 = scmp.ne.s32.totalorder %s55, %s56
      %p68 = scmp.eq.s32.totalorder %s25, 1
      %p69 = por %p67, %p68
      %p71 = scmp.ne.s32.totalorder %s56, %s70
      %p72 = scmp.eq.s32.totalorder %s25, 0
      %p73 = por %p71, %p72
      %s75 = sadd.s32 %s74, 1
      %p78 = scmp.eq.s32.totalorder %s19, 1
      %p79 = scmp.ne.s32.totalorder %s74, %s76
      %p80 = scmp.eq.s32.totalorder %s19, 0
      %p81 = por %p79, %p80
      %p82 = scmp.ne.s32.totalorder %s74, %s76
      %p83 = scmp.eq.s32.totalorder %s24, 1
      %p84 = por %p82, %p83
      %p85 = scmp.ne.s32.totalorder %s76, %s77
      %p86 = scmp.eq.s32.totalorder %s24, 0
      %p87 = por %p85, %p86
      %p88 = scmp.ne.s32.totalorder %s76, %s77
      %p89 = scmp.eq.s32.totalorder %s25, 1
      %p90 = por %p88, %p89
      %p92 = scmp.ne.s32.totalorder %s77, %s91
      %p93 = scmp.eq.s32.totalorder %s25, 0
      %p94 = por %p92, %p93
      %s96 = sadd.s32 %s95, 1
      %p99 = scmp.eq.s32.totalorder %s19, 1
      %p100 = scmp.ne.s32.totalorder %s95, %s97
      %p101 = scmp.eq.s32.totalorder %s19, 0
      %p102 = por %p100, %p101
      %p103 = scmp.ne.s32.totalorder %s95, %s97
      %p104 = scmp.eq.s32.totalorder %s24, 1
      %p105 = por %p103, %p104
      %p106 = scmp.ne.s32.totalorder %s97, %s98
      %p107 = scmp.eq.s32.totalorder %s24, 0
      %p108 = por %p106, %p107
      %p109 = scmp.ne.s32.totalorder %s97, %s98
      %p110 = scmp.eq.s32.totalorder %s25, 1
      %p111 = por %p109, %p110
      %p113 = scmp.ne.s32.totalorder %s98, %s112
      %p114 = scmp.eq.s32.totalorder %s25, 0
      %p115 = por %p113, %p114
      %s117 = sadd.s32 %s116, 1
      %p120 = scmp.eq.s32.totalorder %s19, 1
      %p121 = scmp.ne.s32.totalorder %s116, %s118
      %p122 = scmp.eq.s32.totalorder %s19, 0
      %p123 = por %p121, %p122
      %p124 = scmp.ne.s32.totalorder %s116, %s118
      %p125 = scmp.eq.s32.totalorder %s24, 1
      %p126 = por %p124, %p125
      %p127 = scmp.ne.s32.totalorder %s118, %s119
      %p128 = scmp.eq.s32.totalorder %s24, 0
      %p129 = por %p127, %p128
      %p130 = scmp.ne.s32.totalorder %s118, %s119
      %p131 = scmp.eq.s32.totalorder %s25, 1
      %p132 = por %p130, %p131
      %p134 = scmp.ne.s32.totalorder %s119, %s133
      %p135 = scmp.eq.s32.totalorder %s25, 0
      %p136 = por %p134, %p135
      %s137 = ssub.s32 %s19, %s26
      %p138 = scmp.eq.s32.totalorder %s137, 0
      %s140 = sadd.s32 %s139, 1
      %s141 = scalar_select %p138, %s139, %s140
      %p144 = pneg %p138
      %p145 = scmp.eq.s32.totalorder %s19, 1
      %p146 = por %p144, %p145
      %p147 = scmp.ne.s32.totalorder %s139, %s142
      %p148 = scmp.eq.s32.totalorder %s19, 0
      %p149 = por %p147, %p148
      %p150 = scmp.ne.s32.totalorder %s139, %s142
      %p151 = scmp.eq.s32.totalorder %s24, 1
      %p152 = por %p150, %p151
      %p153 = scmp.ne.s32.totalorder %s142, %s143
      %p154 = scmp.eq.s32.totalorder %s24, 0
      %p155 = por %p153, %p154
      %p156 = scmp.ne.s32.totalorder %s142, %s143
      %p157 = scmp.eq.s32.totalorder %s25, 1
      %p158 = por %p156, %p157
      %p160 = scmp.ne.s32.totalorder %s143, %s159
      %p161 = scmp.eq.s32.totalorder %s25, 0
      %p162 = por %p160, %p161
      %p163 = scmp.le.s32.totalorder 1, %s19
      %p164 = scmp.lt.s32.totalorder %s19, 3
      %p165 = pnand %p163, %p164
      %p166 = pneg %p165
      // Predicated region
      $region9: #{tpu_custom_call.1} parent=5 // pred_check
        _
      $region10: #{tpu_custom_call.1} parent=5 // pred_check_branch
        %168 = sbr.rel (%p165) target = $region12
      $region11: #{tpu_custom_call.1} parent=5 // pred_region
        %s169 = ssub.s32 %s19, 1
        // Predicated region
        $region13: #{tpu_custom_call.1} parent=11 // pred_check
          %p170 = pneg %p66
        $region14: #{tpu_custom_call.1} parent=11 // pred_check_branch
          %172 = sbr.rel (%p170) target = $region16
        $region15: #{tpu_custom_call.1} parent=11 // pred_region
          %s174 = ssub.s32 512, 512
          %175 = vsyncadd [#allocation6], %s174
          %s176 = sshll.u32 [#allocation5], 4
          %s177 = int_to_ptr.vmem [resolvable:$true] %s176
          %182 = dma.hbm_to_vmem [thread:$0]  %s1, 512, %s177, [#allocation6], 128, 128, 8
        $region16: #{tpu_custom_call.1} parent=11 // pred_fallthru
          _
        // Predicated region
        $region17: #{tpu_custom_call.1} parent=11 // pred_check
          %p183 = pneg %p87
        $region18: #{tpu_custom_call.1} parent=11 // pred_check_branch
          %185 = sbr.rel (%p183) target = $region20
        $region19: #{tpu_custom_call.1} parent=11 // pred_region
          %s187 = ssub.s32 2048, 2048
          %188 = vsyncadd [#allocation6], %s187
          %s189 = sshll.u32 [#allocation7], 4
          %s190 = int_to_ptr.vmem [resolvable:$true] %s189
          %195 = dma.hbm_to_vmem [thread:$0]  %s2, 2048, %s190, [#allocation6], 128, 128, 8
        $region20: #{tpu_custom_call.1} parent=11 // pred_fallthru
          _
        // Predicated region
        $region21: #{tpu_custom_call.1} parent=11 // pred_check
          %p196 = pneg %p108
        $region22: #{tpu_custom_call.1} parent=11 // pred_check_branch
          %198 = sbr.rel (%p196) target = $region24
        $region23: #{tpu_custom_call.1} parent=11 // pred_region
          %s200 = ssub.s32 16, 16
          %201 = vsyncadd [#allocation9], %s200
          %s203 = sshll.u32 [#allocation8], 4
          %s204 = int_to_ptr.vmem [resolvable:$true] %s203
          %206 = dma.hbm_to_vmem [thread:$0]  %s3, 16, %s204, [#allocation9]
        $region24: #{tpu_custom_call.1} parent=11 // pred_fallthru
          _
        // Predicated region
        $region25: #{tpu_custom_call.1} parent=11 // pred_check
          %p207 = pneg %p129
        $region26: #{tpu_custom_call.1} parent=11 // pred_check_branch
          %209 = sbr.rel (%p207) target = $region28
        $region27: #{tpu_custom_call.1} parent=11 // pred_region
          %s211 = ssub.s32 16, 16
          %212 = vsyncadd [#allocation9], %s211
          %s214 = sshll.u32 [#allocation10], 4
          %s215 = int_to_ptr.vmem [resolvable:$true] %s214
          %217 = dma.hbm_to_vmem [thread:$0]  %s4, 16, %s215, [#allocation9]
        $region28: #{tpu_custom_call.1} parent=11 // pred_fallthru
          _
      $region12: #{tpu_custom_call.1} parent=5 // pred_fallthru
        _
      %p218 = scmp.lt.s32.totalorder %s19, 2
      // Predicated region
      $region29: #{tpu_custom_call.1} parent=5 // pred_check
        %p219 = pneg %p218
      $region30: #{tpu_custom_call.1} parent=5 // pred_check_branch
        %221 = sbr.rel (%p219) target = $region32
      $region31: #{tpu_custom_call.1} parent=5 // pred_region
        // Predicated region
        $region33: #{tpu_custom_call.1} parent=31 // pred_check
          %p222 = pneg %p39
        $region34: #{tpu_custom_call.1} parent=31 // pred_check_branch
          %224 = sbr.rel (%p222) target = $region36
        $region35: #{tpu_custom_call.1} parent=31 // pred_region
          %s225 = sand.u32 %s29, 1
          %s226 = scalar_lea.sflag [#allocation3], %s225
          %s227 = sand.u32 %s29, 1
          %s228 = smul.addr %s227, 8
          %s229 = scalar_lea.vmem [#allocation2], %s228
          %s231 = ssub.s32 128, 128
          %232 = vsyncadd %s226, %s231
          %s233 = smul.addr %s19, 128
          %s234 = scalar_lea.hbm %s0, %s233
          %s236 = sshll.u32 %s229, 4
          %s237 = int_to_ptr.vmem [resolvable:$true] %s236
          %239 = dma.hbm_to_vmem [thread:$0]  %s234, 128, %s237, %s226
        $region36: #{tpu_custom_call.1} parent=31 // pred_fallthru
          _
      $region32: #{tpu_custom_call.1} parent=5 // pred_fallthru
        _
      %p240 = scmp.le.s32.totalorder 1, %s19
      %p241 = scmp.lt.s32.totalorder %s19, 3
      %p242 = pnand %p240, %p241
      %p243 = pneg %p242
      // Predicated region
      $region37: #{tpu_custom_call.1} parent=5 // pred_check
        _
      $region38: #{tpu_custom_call.1} parent=5 // pred_check_branch
        %245 = sbr.rel (%p242) target = $region40
      $region39: #{tpu_custom_call.1} parent=5 // pred_region
        %s246 = ssub.s32 %s19, 1
        %s247 = sand.u32 %s32, 1
        %s248 = scalar_lea.sflag [#allocation3], %s247
        %s249 = sand.u32 %s32, 1
        %s250 = smul.addr %s249, 8
        %s251 = scalar_lea.vmem [#allocation2], %s250
        // Predicated region
        $region41: #{tpu_custom_call.1} parent=39 // pred_check
          %p252 = pneg %p45
        $region42: #{tpu_custom_call.1} parent=39 // pred_check_branch
          %254 = sbr.rel (%p252) target = $region44
        $region43: #{tpu_custom_call.1} parent=39 // pred_region
          %255 = dma.done %s248, 128
        $region44: #{tpu_custom_call.1} parent=39 // pred_fallthru
          _
        // Predicated region
        $region45: #{tpu_custom_call.1} parent=39 // pred_check
          %p256 = pneg %p66
        $region46: #{tpu_custom_call.1} parent=39 // pred_check_branch
          %258 = sbr.rel (%p256) target = $region48
        $region47: #{tpu_custom_call.1} parent=39 // pred_region
          %259 = dma.done [#allocation6], 512
        $region48: #{tpu_custom_call.1} parent=39 // pred_fallthru
          _
        // Predicated region
        $region49: #{tpu_custom_call.1} parent=39 // pred_check
          %p260 = pneg %p87
        $region50: #{tpu_custom_call.1} parent=39 // pred_check_branch
          %262 = sbr.rel (%p260) target = $region52
        $region51: #{tpu_custom_call.1} parent=39 // pred_region
          %263 = dma.done [#allocation6], 2048
        $region52: #{tpu_custom_call.1} parent=39 // pred_fallthru
          _
        // Predicated region
        $region53: #{tpu_custom_call.1} parent=39 // pred_check
          %p264 = pneg %p108
        $region54: #{tpu_custom_call.1} parent=39 // pred_check_branch
          %266 = sbr.rel (%p264) target = $region56
        $region55: #{tpu_custom_call.1} parent=39 // pred_region
          %267 = dma.done [#allocation9], 16
        $region56: #{tpu_custom_call.1} parent=39 // pred_fallthru
          _
        // Predicated region
        $region57: #{tpu_custom_call.1} parent=39 // pred_check
          %p268 = pneg %p129
        $region58: #{tpu_custom_call.1} parent=39 // pred_check_branch
          %270 = sbr.rel (%p268) target = $region60
        $region59: #{tpu_custom_call.1} parent=39 // pred_region
          %271 = dma.done [#allocation9], 16
        $region60: #{tpu_custom_call.1} parent=39 // pred_fallthru
          _
        %s272 = sand.u32 %s32, 1
        %s273 = scalar_lea.sflag [#allocation3], %s272
        %s274 = sand.u32 %s32, 1
        %s275 = smul.addr %s274, 8
        %s276 = scalar_lea.vmem [#allocation2], %s275
        %p277 = pneg %p45
        %p278 = pneg %p42
        %p279 = pneg %p66
        %p280 = pneg %p63
        %p281 = pneg %p87
        %p282 = pneg %p84
        %p283 = pneg %p108
        %p284 = pneg %p105
        %p285 = pneg %p129
        %p286 = pneg %p126
        %p287 = pneg %p155
        %p288 = pneg %p152
        %s289 = sand.u32 %s142, 1
        %s290 = scalar_lea.sflag [#allocation4], %s289
        %s291 = sand.u32 %s142, 1
        %s292 = smul.addr %s291, 8
        %s293 = scalar_lea.vmem [#allocation11], %s292
        %v294 = vld [vmem:[%s251] sm:$0xff]
        %v295 = vld [vmem:[#allocation5] sm:$0xff]
        %v296 = vld [vmem:[#allocation5 + $0x8] sm:$0xff]
        %v297 = vld [vmem:[#allocation5 + $0x10] sm:$0xff]
        %v298 = vld [vmem:[#allocation5 + $0x18] sm:$0xff]
        %vm299 = vcmask 261120
        %v301 = vsel %vm299, %v294, 0
        %303 = vmatprep.subr.mxu0 0.0
        %304 = vmatpush1.msra.mxu0 %v295
        %305 = vmatprep.subr.mxu0 0.0
        %306 = vmatpush1.msra.mxu0 %v296
        %307 = vmatprep.subr.mxu0 0.0
        %308 = vmatpush1.msra.mxu0 %v297
        %309 = vmatprep.subr.mxu0 0.0
        %310 = vmatpush1.msra.mxu0 %v298
        %311 = vmatprep.subr.mxu0 0.0
        %312 = vmatpush1.msra.mxu0 0.0
        %313 = vmatprep.subr.mxu0 0.0
        %314 = vmatpush1.msra.mxu0 0.0
        %315 = vmatprep.subr.mxu0 0.0
        %316 = vmatpush1.msra.mxu0 0.0
        %317 = vmatprep.subr.mxu0 0.0
        %318 = vmatpush1.msra.mxu0 0.0
        %319 = vmatprep.subr.mxu0 0.0
        %320 = vmatpush1.msra.mxu0 0.0
        %321 = vmatprep.subr.mxu0 0.0
        %322 = vmatpush1.msra.mxu0 0.0
        %323 = vmatprep.subr.mxu0 0.0
        %324 = vmatpush1.msra.mxu0 0.0
        %325 = vmatprep.subr.mxu0 0.0
        %326 = vmatpush1.msra.mxu0 0.0
        %327 = vmatprep.subr.mxu0 0.0
        %328 = vmatpush1.msra.mxu0 0.0
        %329 = vmatprep.subr.mxu0 0.0
        %330 = vmatpush1.msra.mxu0 0.0
        %331 = vmatprep.subr.mxu0 0.0
        %332 = vmatpush1.msra.mxu0 0.0
        %333 = vmatprep.subr.mxu0 0.0
        %334 = vmatpush1.msra.mxu0 0.0
        %335 = vmatprep.subr.mxu0 0.0
        %336 = vmatpush1.msra.mxu0 0.0
        %337 = vmatprep.subr.mxu0 0.0
        %338 = vmatpush1.msra.mxu0 0.0
        %339 = vmatprep.subr.mxu0 0.0
        %340 = vmatpush1.msra.mxu0 0.0
        %341 = vmatprep.subr.mxu0 0.0
        %342 = vmatpush1.msra.mxu0 0.0
        %343 = vmatprep.subr.mxu0 0.0
        %344 = vmatpush1.msra.mxu0 0.0
        %345 = vmatprep.subr.mxu0 0.0
        %346 = vmatpush1.msra.mxu0 0.0
        %347 = vmatprep.subr.mxu0 0.0
        %348 = vmatpush1.msra.mxu0 0.0
        %349 = vmatprep.subr.mxu0 0.0
        %350 = vmatpush1.msra.mxu0 0.0
        %351 = vmatprep.subr.mxu0 0.0
        %352 = vmatpush1.msra.mxu0 0.0
        %353 = vmatprep.subr.mxu0 0.0
        %354 = vmatpush1.msra.mxu0 0.0
        %355 = vmatprep.subr.mxu0 0.0
        %356 = vmatpush1.msra.mxu0 0.0
        %357 = vmatprep.subr.mxu0 0.0
        %358 = vmatpush1.msra.mxu0 0.0
        %359 = vmatprep.subr.mxu0 0.0
        %360 = vmatpush1.msra.mxu0 0.0
        %361 = vmatprep.subr.mxu0 0.0
        %362 = vmatpush1.msra.mxu0 0.0
        %363 = vmatprep.subr.mxu0 0.0
        %364 = vmatpush1.msra.mxu0 0.0
        %365 = vmatprep.subr.mxu0 0.0
        %366 = vmatpush1.msra.mxu0 0.0
        %367 = vmatprep.mubr.f32.mxu0 0.0
        %368 = vmatmul.mubr.f32.gmra.mrb[0].mxu0 %v301
        %v369 = vpop.f32.mrb[0].mxu0
        %v370 = vadd.f32 0.0, %v369
        %v371 = vpop.f32.mrb[0].mxu0
        %372 = vdwg.mxu0
        %v373 = vld [vmem:[#allocation7] sm:$0xff]
        %v374 = vld [vmem:[#allocation7 + $0x8] sm:$0xff]
        %v375 = vld [vmem:[#allocation7 + $0x10] sm:$0xff]
        %v376 = vld [vmem:[#allocation7 + $0x18] sm:$0xff]
        %v377 = vld [vmem:[#allocation7 + $0x20] sm:$0xff]
        %v378 = vld [vmem:[#allocation7 + $0x28] sm:$0xff]
        %v379 = vld [vmem:[#allocation7 + $0x30] sm:$0xff]
        %v380 = vld [vmem:[#allocation7 + $0x38] sm:$0xff]
        %v381 = vld [vmem:[#allocation7 + $0x40] sm:$0xff]
        %v382 = vld [vmem:[#allocation7 + $0x48] sm:$0xff]
        %v383 = vld [vmem:[#allocation7 + $0x50] sm:$0xff]
        %v384 = vld [vmem:[#allocation7 + $0x58] sm:$0xff]
        %v385 = vld [vmem:[#allocation7 + $0x60] sm:$0xff]
        %v386 = vld [vmem:[#allocation7 + $0x68] sm:$0xff]
        %v387 = vld [vmem:[#allocation7 + $0x70] sm:$0xff]
        %v388 = vld [vmem:[#allocation7 + $0x78] sm:$0xff]
        %389 = vmatprep.subr.mxu0 0.0
        %390 = vmatpush1.msra.mxu0 %v373
        %391 = vmatprep.subr.mxu0 0.0
        %392 = vmatpush1.msra.mxu0 %v374
        %393 = vmatprep.subr.mxu0 0.0
        %394 = vmatpush1.msra.mxu0 %v375
        %395 = vmatprep.subr.mxu0 0.0
        %396 = vmatpush1.msra.mxu0 %v376
        %397 = vmatprep.subr.mxu0 0.0
        %398 = vmatpush1.msra.mxu0 %v377
        %399 = vmatprep.subr.mxu0 0.0
        %400 = vmatpush1.msra.mxu0 %v378
        %401 = vmatprep.subr.mxu0 0.0
        %402 = vmatpush1.msra.mxu0 %v379
        %403 = vmatprep.subr.mxu0 0.0
        %404 = vmatpush1.msra.mxu0 %v380
        %405 = vmatprep.subr.mxu0 0.0
        %406 = vmatpush1.msra.mxu0 %v381
        %407 = vmatprep.subr.mxu0 0.0
        %408 = vmatpush1.msra.mxu0 %v382
        %409 = vmatprep.subr.mxu0 0.0
        %410 = vmatpush1.msra.mxu0 %v383
        %411 = vmatprep.subr.mxu0 0.0
        %412 = vmatpush1.msra.mxu0 %v384
        %413 = vmatprep.subr.mxu0 0.0
        %414 = vmatpush1.msra.mxu0 %v385
        %415 = vmatprep.subr.mxu0 0.0
        %416 = vmatpush1.msra.mxu0 %v386
        %417 = vmatprep.subr.mxu0 0.0
        %418 = vmatpush1.msra.mxu0 %v387
        %419 = vmatprep.subr.mxu0 0.0
        %420 = vmatpush1.msra.mxu0 %v388
        %421 = vmatprep.subr.mxu0 0.0
        %422 = vmatpush1.msra.mxu0 0.0
        %423 = vmatprep.subr.mxu0 0.0
        %424 = vmatpush1.msra.mxu0 0.0
        %425 = vmatprep.subr.mxu0 0.0
        %426 = vmatpush1.msra.mxu0 0.0
        %427 = vmatprep.subr.mxu0 0.0
        %428 = vmatpush1.msra.mxu0 0.0
        %429 = vmatprep.subr.mxu0 0.0
        %430 = vmatpush1.msra.mxu0 0.0
        %431 = vmatprep.subr.mxu0 0.0
        %432 = vmatpush1.msra.mxu0 0.0
        %433 = vmatprep.subr.mxu0 0.0
        %434 = vmatpush1.msra.mxu0 0.0
        %435 = vmatprep.subr.mxu0 0.0
        %436 = vmatpush1.msra.mxu0 0.0
        %437 = vmatprep.subr.mxu0 0.0
        %438 = vmatpush1.msra.mxu0 0.0
        %439 = vmatprep.subr.mxu0 0.0
        %440 = vmatpush1.msra.mxu0 0.0
        %441 = vmatprep.subr.mxu0 0.0
        %442 = vmatpush1.msra.mxu0 0.0
        %443 = vmatprep.subr.mxu0 0.0
        %444 = vmatpush1.msra.mxu0 0.0
        %445 = vmatprep.subr.mxu0 0.0
        %446 = vmatpush1.msra.mxu0 0.0
        %447 = vmatprep.subr.mxu0 0.0
        %448 = vmatpush1.msra.mxu0 0.0
        %449 = vmatprep.subr.mxu0 0.0
        %450 = vmatpush1.msra.mxu0 0.0
        %451 = vmatprep.subr.mxu0 0.0
        %452 = vmatpush1.msra.mxu0 0.0
        %453 = vmatprep.mubr.f32.mxu0 0.0
        %454 = vmatmul.mubr.f32.gmra.mrb[0].mxu0 %v370
        %v455 = vpop.f32.mrb[0].mxu0
        %v456 = vadd.f32 %v294, %v455
        %v457 = vpop.f32.mrb[0].mxu0
        %458 = vdwg.mxu0
        %v459 = vsel %vm299, %v456, 0.0
        %460 = vadd.xlane.f32.xlu0 %v459
        %v461 = vpop.xlane.xlu0 %460
        %v462 = vrcp.pop 32.0
        %v463 = vmul.f32 %v461, %v462
        %v464 = vsub.f32 %v456, %v463
        %v465 = vmul.f32 %v464, %v464
        %v466 = vsel %vm299, %v465, 0.0
        %467 = vadd.xlane.f32.xlu0 %v466
        %v468 = vpop.xlane.xlu0 %467
        %v469 = vmul.f32 %v468, %v462
        %v470 = vadd.f32 %v469, 1e-05
        %v471 = vrsqrt.pop %v470
        %v472 = vmul.f32 %v464, %v471
        %v473 = vld [vmem:[#allocation8] sm:$0x1]
        %v475 = vlaneseq
        %v476 = vshrl.u32 %v475, 7
        %v477 = vsub.s32 0, %v476
        %v478 = vrot.slane %v473, %v477
        %v480 = vmul.f32 %v472, %v478
        %v481 = vld [vmem:[#allocation10] sm:$0x1]
        %v483 = vlaneseq
        %v484 = vshrl.u32 %v483, 7
        %v485 = vsub.s32 0, %v484
        %v486 = vrot.slane %v481, %v485
        %v488 = vadd.f32 %v480, %v486
        %489 = vst.msk [vmem:[%s293] sm:$0xff] %vm299, %v488
        %s490 = sand.u32 %s142, 1
        %s491 = scalar_lea.sflag [#allocation4], %s490
        %s492 = sand.u32 %s142, 1
        %s493 = smul.addr %s492, 8
        %s494 = scalar_lea.vmem [#allocation11], %s493
        // Predicated region
        $region61: #{tpu_custom_call.1} parent=39 // pred_check
          %p495 = pneg %p152
        $region62: #{tpu_custom_call.1} parent=39 // pred_check_branch
          %497 = sbr.rel (%p495) target = $region64
        $region63: #{tpu_custom_call.1} parent=39 // pred_region
          %s499 = ssub.s32 128, 128
          %500 = vsyncadd %s491, %s499
          %s501 = smul.addr %s24, 128
          %s502 = scalar_lea.hbm %s5, %s501
          %s504 = sshll.u32 %s494, 4
          %s505 = int_to_ptr.vmem [resolvable:$true] %s504
          %507 = dma.vmem_to_hbm [thread:$0]  %s505, 128, %s502, %s491
        $region64: #{tpu_custom_call.1} parent=39 // pred_fallthru
          _
      $region40: #{tpu_custom_call.1} parent=5 // pred_fallthru
        _
      %p508 = scmp.le.s32.totalorder 2, %s19
      // Predicated region
      $region65: #{tpu_custom_call.1} parent=5 // pred_check
        %p509 = pneg %p508
      $region66: #{tpu_custom_call.1} parent=5 // pred_check_branch
        %511 = sbr.rel (%p509) target = $region68
      $region67: #{tpu_custom_call.1} parent=5 // pred_region
        %s512 = ssub.s32 %s19, 2
        // Predicated region
        $region69: #{tpu_custom_call.1} parent=67 // pred_check
          %p513 = pneg %p158
        $region70: #{tpu_custom_call.1} parent=67 // pred_check_branch
          %515 = sbr.rel (%p513) target = $region72
        $region71: #{tpu_custom_call.1} parent=67 // pred_region
          %s516 = sand.u32 %s143, 1
          %s517 = scalar_lea.sflag [#allocation4], %s516
          %s518 = sand.u32 %s143, 1
          %s519 = smul.addr %s518, 8
          %s520 = scalar_lea.vmem [#allocation11], %s519
          %521 = dma.done %s517, 128
        $region72: #{tpu_custom_call.1} parent=67 // pred_fallthru
          _
      $region68: #{tpu_custom_call.1} parent=5 // pred_fallthru
        _
    $region6: #{tpu_custom_call.1} parent=1 // loop_footer
      %s23 = sadd.s32 1, %s19
    $region7: #{tpu_custom_call.1} parent=1 // loop_footer_branch
      %18 = sbr.rel target = $region3
    $region8: #{tpu_custom_call.1} parent=1 // loop_exit
      _
    %522 = vsyncpa [#allocation3], 1
    %s523 = scalar_lea.sflag [#allocation3], 1
    %524 = vsyncpa %s523, 1
    %525 = vsyncpa [#allocation6], 1
    %526 = vsyncpa [#allocation9], 1
    %527 = vsyncpa [#allocation4], 1
    %s528 = scalar_lea.sflag [#allocation4], 1
    %529 = vsyncpa %s528, 1

</llo_original>
